<compile_context>
chip_gen: v6e
topology: v6e:2x2x1
jax: 0.10.0
libtpu: 0.0.40
codegen_flags: <defaults>
</compile_context>

<pallas_src>
import functools

import jax
import jax.numpy as jnp
from jax import lax
from jax.experimental import pallas as pl
from jax.experimental.pallas import tpu as pltpu

LOG_SIG_MAX = 2.0
LOG_SIG_MIN = -20.0

_LANE = 128
_SUBLANE_F32 = 8
_SUBLANE_BF16 = 16


def _round_up(x, m):
    return ((x + m - 1) // m) * m


def _num_tensorcores():
    """Best-effort TensorCore count (2 on v7x-style chips, else 1)."""
    try:
        return max(int(getattr(jax.devices()[0], "num_cores", 1)), 1)
    except Exception:
        return 1


def _default_compute_dtype(hidden):
    """bf16 on bf16-native MXUs once the kernel is MXU-bound, else f32."""
    if hidden < 1024:
        return jnp.float32
    try:
        kind = jax.devices()[0].device_kind.lower()
    except Exception:
        return jnp.float32
    if ("v6" in kind) or ("v7" in kind):
        return jnp.bfloat16
    return jnp.float32


def _actor_kernel(x_ref, w1_ref, b1_ref, w2_ref, b2_ref, wh_ref, bh_ref,
                  out_ref, *, output_dim):
    """Fused MLP body: x -> relu(l1) -> relu(l2) -> [mean | log_std] + clamp."""

    def dot(a, w_ref):
        # Weights were pre-cast to the compute dtype in the wrapper; only the
        # (much smaller) activation tile is cast here.  f32 accumulation.
        return jnp.dot(a.astype(w_ref.dtype), w_ref[...],
                       preferred_element_type=jnp.float32)

    x = x_ref[...]

    # linear1 + ReLU
    h = jnp.maximum(dot(x, w1_ref) + b1_ref[...], 0.0)
    # linear2 + ReLU
    h = jnp.maximum(dot(h, w2_ref) + b2_ref[...], 0.0)

    # fused mean|log_std head: one MXU pass, one lane-dense store
    y = dot(h, wh_ref) + bh_ref[...]

    # clamp only the log_std columns [output_dim, 2*output_dim)
    col = lax.broadcasted_iota(jnp.int32, y.shape, 1)
    is_log_std = (col >= output_dim) & (col < 2 * output_dim)
    y = jnp.where(is_log_std, jnp.clip(y, LOG_SIG_MIN, LOG_SIG_MAX), y)

    out_ref[...] = y.astype(out_ref.dtype)


def soft_actor_forward(state, params, *, batch_tile=None, compute_dtype=None):
    """Pallas implementation of SoftActorNet.forward -> (mean, log_std).

    `params` = (w1, b1, w2, b2, wm, bm, ws, bs), weights already [in, out],
    biases [1, out] (see init_params).
    """
    B, input_dim = state.shape
    w1, b1, w2, b2, wm, bm, ws, bs = params
    hidden = w1.shape[1]
    output_dim = wm.shape[1]

    if compute_dtype is None:
        compute_dtype = _default_compute_dtype(hidden)
    is_bf16 = jnp.dtype(compute_dtype) == jnp.dtype(jnp.bfloat16)
    sublane = _SUBLANE_BF16 if is_bf16 else _SUBLANE_F32

    # ---- hidden / fused-head columns padded to lane-dense (x128) slabs;
    #      weights pre-cast to compute_dtype (no in-kernel weight casts) ------
    h_p = _round_up(hidden, _LANE)
    o_fused = 2 * output_dim
    o_p = _round_up(o_fused, _LANE)

    def pad2(a, rows, cols, dtype):
        a = jnp.pad(a, ((0, rows - a.shape[0]), (0, cols - a.shape[1])))
        return a.astype(dtype)

    w1p = pad2(w1, input_dim, h_p, compute_dtype)
    b1p = pad2(b1, 1, h_p, jnp.float32)
    w2p = pad2(w2, h_p, h_p, compute_dtype)
    b2p = pad2(b2, 1, h_p, jnp.float32)
    # fuse the two heads: [wm | ws] -> [hidden, 2*out], then pad to lane width
    whp = pad2(jnp.concatenate([wm, ws], axis=1), h_p, o_p, compute_dtype)
    bhp = pad2(jnp.concatenate([bm, bs], axis=1), 1, o_p, jnp.float32)

    # ---- batch tiling: near-equal sublane-rounded tiles (minimal overshoot);
    #      force >= num_cores grid steps on multi-TC chips ---------------------
    max_tile = 512 if batch_tile is None else max(_round_up(batch_tile, sublane),
                                                  sublane)
    num_tiles = max(-(-B // max_tile), 1)
    n_cores = _num_tensorcores()
    if n_cores > 1 and B >= n_cores * sublane:
        num_tiles = max(num_tiles, n_cores)
    tile = _round_up(-(-B // num_tiles), sublane)
    b_p = tile * num_tiles

    # x keeps its natural [*, input_dim] last dim (full-dim block => one
    # contiguous DMA per tile); only batch rows are zero-padded.
    x = state if b_p == B else jnp.pad(state, ((0, b_p - B), (0, 0)))

    # ---- VMEM budget: resident weights + double-buffered io tiles + scratch --
    w_itemsize = jnp.dtype(compute_dtype).itemsize
    weight_bytes = ((w1p.size + w2p.size + whp.size) * w_itemsize
                    + (b1p.size + b2p.size + bhp.size) * 4)
    io_bytes = 2 * tile * input_dim * 4 + 2 * tile * o_p * 4
    act_bytes = 3 * tile * h_p * 4
    needed = weight_bytes + io_bytes + act_bytes
    vmem_limit_bytes = int(min(max(2 * needed, 32 << 20), 64 << 20))

    # weights / biases: untiled, resident in VMEM (no per-step re-DMA)
    vmem_spec = pl.BlockSpec(memory_space=pltpu.MemorySpace.VMEM)

    kernel = functools.partial(_actor_kernel, output_dim=output_dim)

    fused_out = pl.pallas_call(
        kernel,
        out_shape=jax.ShapeDtypeStruct((b_p, o_p), jnp.float32),
        grid=(num_tiles,),
        in_specs=[
            pl.BlockSpec((tile, input_dim), lambda i: (i, 0)),
            vmem_spec, vmem_spec,   # w1, b1
            vmem_spec, vmem_spec,   # w2, b2
            vmem_spec, vmem_spec,   # fused head w, b
        ],
        out_specs=pl.BlockSpec((tile, o_p), lambda i: (i, 0)),
        compiler_params=pltpu.CompilerParams(
            dimension_semantics=("parallel",),
            vmem_limit_bytes=vmem_limit_bytes),
    )(x, w1p, b1p, w2p, b2p, whp, bhp)

    mean = fused_out[:B, :output_dim]
    log_std = fused_out[:B, output_dim:o_fused]
    return mean, log_std


def init_params(key, input_dim, output_dim, hidden_size):
    """PyTorch-style uniform(-1/sqrt(fan_in), 1/sqrt(fan_in)) init.

    Weights are returned already transposed to [in, out]; biases as [1, out].
    """
    keys = jax.random.split(key, 8)

    def linear(kw, kb, fan_in, fan_out):
        bound = 1.0 / jnp.sqrt(fan_in)
        w = jax.random.uniform(kw, (fan_in, fan_out), jnp.float32, -bound, bound)
        b = jax.random.uniform(kb, (1, fan_out), jnp.float32, -bound, bound)
        return w, b

    w1, b1 = linear(keys[0], keys[1], input_dim, hidden_size)
    w2, b2 = linear(keys[2], keys[3], hidden_size, hidden_size)
    wm, bm = linear(keys[4], keys[5], hidden_size, output_dim)
    ws, bs = linear(keys[6], keys[7], hidden_size, output_dim)
    return (w1, b1, w2, b2, wm, bm, ws, bs)


def _reference_forward(state, params):
    w1, b1, w2, b2, wm, bm, ws, bs = params
    h = jnp.maximum(state @ w1 + b1, 0.0)
    h = jnp.maximum(h @ w2 + b2, 0.0)
    mean = h @ wm + bm
    log_std = jnp.clip(h @ ws + bs, LOG_SIG_MIN, LOG_SIG_MAX)
    return mean, log_std


if __name__ == "__main__":
    # Small shapes consistent with the module: state is [batch, input_dim].
    batch, input_dim, output_dim, hidden_size = 16, 16, 4, 32

    key = jax.random.PRNGKey(0)
    k_params, k_state = jax.random.split(key)

    params = init_params(k_params, input_dim, output_dim, hidden_size)
    state = jax.random.normal(k_state, (batch, input_dim), jnp.float32)

    ref_mean, ref_log_std = _reference_forward(state, params)

    # f32 matmul path: tight tolerance against the plain-JAX reference.
    fwd_f32 = jax.jit(functools.partial(soft_actor_forward,
                                        compute_dtype=jnp.float32))
    mean, log_std = fwd_f32(state, params)
    jax.block_until_ready((mean, log_std))
    assert mean.shape == (batch, output_dim)
    assert log_std.shape == (batch, output_dim)
    assert jnp.allclose(mean, ref_mean, atol=1e-5, rtol=1e-5)
    assert jnp.allclose(log_std, ref_log_std, atol=1e-5, rtol=1e-5)

    # bf16 matmul path (v6e/v7x fast path): validated with looser tolerance.
    fwd_bf16 = jax.jit(functools.partial(soft_actor_forward,
                                         compute_dtype=jnp.bfloat16))
    mean_bf, log_std_bf = fwd_bf16(state, params)
    jax.block_until_ready((mean_bf, log_std_bf))
    assert jnp.allclose(mean_bf, ref_mean, atol=5e-2, rtol=5e-2)
    assert jnp.allclose(log_std_bf, ref_log_std, atol=5e-2, rtol=5e-2)

    # TODO(synk): `sample()` (rsample + tanh-squash log-prob) needs RNG; only
    # the deterministic forward() is implemented here.
    print("KERNEL_OK")
</pallas_src>

<mosaic_0001>
module attributes {stable_mosaic.version = 11 : i64} {
  func.func @_actor_kernel(%arg0: i32, %arg1: memref<16x16xf32, #tpu.memory_space<vmem>>, %arg2: memref<16x128xf32, #tpu.memory_space<vmem>>, %arg3: memref<1x128xf32, #tpu.memory_space<vmem>>, %arg4: memref<128x128xf32, #tpu.memory_space<vmem>>, %arg5: memref<1x128xf32, #tpu.memory_space<vmem>>, %arg6: memref<128x128xf32, #tpu.memory_space<vmem>>, %arg7: memref<1x128xf32, #tpu.memory_space<vmem>>, %arg8: memref<16x128xf32, #tpu.memory_space<vmem>>) attributes {dimension_semantics = [#tpu.dimension_semantics<parallel>], iteration_bounds = array<i64: 1>, scalar_prefetch = 0 : i64, scratch_operands = 0 : i64, tpu.core_type = #tpu.core_type<tc>, window_params = [{transform_indices = @transform_0, window_bounds = array<i64: 16, 16>}, {pipeline_mode = #tpu.pipeline_mode<synchronous>, transform_indices = @transform_1, window_bounds = array<i64: 16, 128>}, {pipeline_mode = #tpu.pipeline_mode<synchronous>, transform_indices = @transform_2, window_bounds = array<i64: 1, 128>}, {pipeline_mode = #tpu.pipeline_mode<synchronous>, transform_indices = @transform_3, window_bounds = array<i64: 128, 128>}, {pipeline_mode = #tpu.pipeline_mode<synchronous>, transform_indices = @transform_4, window_bounds = array<i64: 1, 128>}, {pipeline_mode = #tpu.pipeline_mode<synchronous>, transform_indices = @transform_5, window_bounds = array<i64: 128, 128>}, {pipeline_mode = #tpu.pipeline_mode<synchronous>, transform_indices = @transform_6, window_bounds = array<i64: 1, 128>}, {transform_indices = @transform_7, window_bounds = array<i64: 16, 128>}]} {
    %c0 = arith.constant 0 : index
    %c0_0 = arith.constant 0 : index
    %0 = vector.load %arg1[%c0, %c0_0] : memref<16x16xf32, #tpu.memory_space<vmem>>, vector<16x16xf32>
    %c0_1 = arith.constant 0 : index
    %c0_2 = arith.constant 0 : index
    %1 = vector.load %arg2[%c0_1, %c0_2] : memref<16x128xf32, #tpu.memory_space<vmem>>, vector<16x128xf32>
    %cst = arith.constant dense<0.000000e+00> : vector<16x128xf32>
    %2 = tpu.matmul %0, %1, %cst {dimension_numbers = #tpu.dot_dimension_numbers<[1], [0], [0], [1], [0, 0, 1, 1], [], []>} : vector<16x16xf32>, vector<16x128xf32>, vector<16x128xf32> -> vector<16x128xf32>
    %c0_3 = arith.constant 0 : index
    %c0_4 = arith.constant 0 : index
    %3 = vector.load %arg3[%c0_3, %c0_4] : memref<1x128xf32, #tpu.memory_space<vmem>>, vector<1x128xf32>
    %4 = vector.broadcast %3 : vector<1x128xf32> to vector<16x128xf32>
    %5 = arith.addf %2, %4 : vector<16x128xf32>
    %cst_5 = arith.constant 0.000000e+00 : f32
    %6 = vector.broadcast %cst_5 : f32 to vector<16x128xf32>
    %7 = arith.maximumf %5, %6 : vector<16x128xf32>
    %c0_6 = arith.constant 0 : index
    %c0_7 = arith.constant 0 : index
    %8 = vector.load %arg4[%c0_6, %c0_7] : memref<128x128xf32, #tpu.memory_space<vmem>>, vector<128x128xf32>
    %cst_8 = arith.constant dense<0.000000e+00> : vector<16x128xf32>
    %9 = tpu.matmul %7, %8, %cst_8 {dimension_numbers = #tpu.dot_dimension_numbers<[1], [0], [0], [1], [0, 0, 1, 1], [], []>} : vector<16x128xf32>, vector<128x128xf32>, vector<16x128xf32> -> vector<16x128xf32>
    %c0_9 = arith.constant 0 : index
    %c0_10 = arith.constant 0 : index
    %10 = vector.load %arg5[%c0_9, %c0_10] : memref<1x128xf32, #tpu.memory_space<vmem>>, vector<1x128xf32>
    %11 = vector.broadcast %10 : vector<1x128xf32> to vector<16x128xf32>
    %12 = arith.addf %9, %11 : vector<16x128xf32>
    %cst_11 = arith.constant 0.000000e+00 : f32
    %13 = vector.broadcast %cst_11 : f32 to vector<16x128xf32>
    %14 = arith.maximumf %12, %13 : vector<16x128xf32>
    %c0_12 = arith.constant 0 : index
    %c0_13 = arith.constant 0 : index
    %15 = vector.load %arg6[%c0_12, %c0_13] : memref<128x128xf32, #tpu.memory_space<vmem>>, vector<128x128xf32>
    %cst_14 = arith.constant dense<0.000000e+00> : vector<16x128xf32>
    %16 = tpu.matmul %14, %15, %cst_14 {dimension_numbers = #tpu.dot_dimension_numbers<[1], [0], [0], [1], [0, 0, 1, 1], [], []>} : vector<16x128xf32>, vector<128x128xf32>, vector<16x128xf32> -> vector<16x128xf32>
    %c0_15 = arith.constant 0 : index
    %c0_16 = arith.constant 0 : index
    %17 = vector.load %arg7[%c0_15, %c0_16] : memref<1x128xf32, #tpu.memory_space<vmem>>, vector<1x128xf32>
    %18 = vector.broadcast %17 : vector<1x128xf32> to vector<16x128xf32>
    %19 = arith.addf %16, %18 : vector<16x128xf32>
    %20 = tpu.iota {dimensions = array<i32: 1>} : vector<16x128xi32>
    %c4_i32 = arith.constant 4 : i32
    %21 = vector.broadcast %c4_i32 : i32 to vector<16x128xi32>
    %22 = arith.cmpi sge, %20, %21 : vector<16x128xi32>
    %c8_i32 = arith.constant 8 : i32
    %23 = vector.broadcast %c8_i32 : i32 to vector<16x128xi32>
    %24 = arith.cmpi slt, %20, %23 : vector<16x128xi32>
    %25 = arith.andi %22, %24 : vector<16x128xi1>
    %cst_17 = arith.constant -2.000000e+01 : f32
    %cst_18 = arith.constant 2.000000e+00 : f32
    %26 = vector.broadcast %cst_17 : f32 to vector<16x128xf32>
    %27 = arith.maximumf %26, %19 : vector<16x128xf32>
    %28 = vector.broadcast %cst_18 : f32 to vector<16x128xf32>
    %29 = arith.minimumf %28, %27 : vector<16x128xf32>
    %30 = arith.select %25, %29, %19 : vector<16x128xi1>, vector<16x128xf32>
    %c0_19 = arith.constant 0 : index
    %c0_20 = arith.constant 0 : index
    %31 = vector.load %arg8[%c0_19, %c0_20] : memref<16x128xf32, #tpu.memory_space<vmem>>, vector<16x128xf32>
    tpu.vector_store %arg8[%c0_19, %c0_20], %30 {strides = array<i32>} : memref<16x128xf32, #tpu.memory_space<vmem>>, vector<16x128xf32>,
    return
  }
  func.func @transform_0(%arg0: i32) -> (i32, i32) {
    %c0_i32 = arith.constant 0 : i32
    %c0_i32_0 = arith.constant 0 : i32
    return %arg0, %c0_i32 : i32, i32
  }
  func.func @transform_1(%arg0: i32) -> (i32, i32) {
    %c0_i32 = arith.constant 0 : i32
    %c0_i32_0 = arith.constant 0 : i32
    %c0_i32_1 = arith.constant 0 : i32
    return %c0_i32, %c0_i32_0 : i32, i32
  }
  func.func @transform_2(%arg0: i32) -> (i32, i32) {
    %c0_i32 = arith.constant 0 : i32
    %c0_i32_0 = arith.constant 0 : i32
    %c0_i32_1 = arith.constant 0 : i32
    return %c0_i32, %c0_i32_0 : i32, i32
  }
  func.func @transform_3(%arg0: i32) -> (i32, i32) {
    %c0_i32 = arith.constant 0 : i32
    %c0_i32_0 = arith.constant 0 : i32
    %c0_i32_1 = arith.constant 0 : i32
    return %c0_i32, %c0_i32_0 : i32, i32
  }
  func.func @transform_4(%arg0: i32) -> (i32, i32) {
    %c0_i32 = arith.constant 0 : i32
    %c0_i32_0 = arith.constant 0 : i32
    %c0_i32_1 = arith.constant 0 : i32
    return %c0_i32, %c0_i32_0 : i32, i32
  }
  func.func @transform_5(%arg0: i32) -> (i32, i32) {
    %c0_i32 = arith.constant 0 : i32
    %c0_i32_0 = arith.constant 0 : i32
    %c0_i32_1 = arith.constant 0 : i32
    return %c0_i32, %c0_i32_0 : i32, i32
  }
  func.func @transform_6(%arg0: i32) -> (i32, i32) {
    %c0_i32 = arith.constant 0 : i32
    %c0_i32_0 = arith.constant 0 : i32
    %c0_i32_1 = arith.constant 0 : i32
    return %c0_i32, %c0_i32_0 : i32, i32
  }
  func.func @transform_7(%arg0: i32) -> (i32, i32) {
    %c0_i32 = arith.constant 0 : i32
    %c0_i32_0 = arith.constant 0 : i32
    return %arg0, %c0_i32 : i32, i32
  }
}

</mosaic_0001>

<llo_original>
// kernel: soft_actor_forward.1
$region0: #{soft_actor_forward.1}
  #allocation0 [shape = 'u32[]', space=smem, size = 0x4, offset = 0x4, fixed_abs, tag = 'smem constant byte address 0x4 - core index']
  #allocation1 [shape = 'u32[144,128]{1,0:T(1,128)}', space=vmem, size = 0x12000, scoped, tag = 'internal scratch']
  %s0 = inlined_call_operand.vmem [shape: f32[16,16], index: 0, kind: input, shape index: {}]
  %s1 = inlined_call_operand.vmem [shape: f32[16,128], index: 1, kind: input, shape index: {}]
  %s2 = inlined_call_operand.vmem [shape: f32[1,128], index: 2, kind: input, shape index: {}]
  %s3 = inlined_call_operand.vmem [shape: f32[128,128], index: 3, kind: input, shape index: {}]
  %s4 = inlined_call_operand.vmem [shape: f32[1,128], index: 4, kind: input, shape index: {}]
  %s5 = inlined_call_operand.vmem [shape: f32[128,128], index: 5, kind: input, shape index: {}]
  %s6 = inlined_call_operand.vmem [shape: f32[1,128], index: 6, kind: input, shape index: {}]
  %s7 = inlined_call_operand.vmem [shape: f32[16,128], index: 7, kind: output, shape index: {}]
  %s8 = sld [smem:[#allocation0]]
  $region38: #{soft_actor_forward.1} parent=0
    _
  %s10 = ssub.s32 1, %s8
  %s11 = scalar_select 0, %s10, %s8
  // Predicated region
  $region2: #{soft_actor_forward.1} parent=0 // pred_check
    _
  $region3: #{soft_actor_forward.1} parent=0 // pred_check_branch
    %13 = sbr.rel (0) target = $region5
  $region4: #{soft_actor_forward.1} parent=0 // pred_region
    _
  $region5: #{soft_actor_forward.1} parent=0 // pred_fallthru
    _
  // Predicated region
  $region6: #{soft_actor_forward.1} parent=0 // pred_check
    _
  $region7: #{soft_actor_forward.1} parent=0 // pred_check_branch
    %15 = sbr.rel (0) target = $region9
  $region8: #{soft_actor_forward.1} parent=0 // pred_region
    _
  $region9: #{soft_actor_forward.1} parent=0 // pred_fallthru
    _
  // Predicated region
  $region10: #{soft_actor_forward.1} parent=0 // pred_check
    _
  $region11: #{soft_actor_forward.1} parent=0 // pred_check_branch
    %17 = sbr.rel (0) target = $region13
  $region12: #{soft_actor_forward.1} parent=0 // pred_region
    _
  $region13: #{soft_actor_forward.1} parent=0 // pred_fallthru
    _
  // Predicated region
  $region14: #{soft_actor_forward.1} parent=0 // pred_check
    _
  $region15: #{soft_actor_forward.1} parent=0 // pred_check_branch
    %19 = sbr.rel (0) target = $region17
  $region16: #{soft_actor_forward.1} parent=0 // pred_region
    _
  $region17: #{soft_actor_forward.1} parent=0 // pred_fallthru
    _
  // Predicated region
  $region18: #{soft_actor_forward.1} parent=0 // pred_check
    _
  $region19: #{soft_actor_forward.1} parent=0 // pred_check_branch
    %21 = sbr.rel (0) target = $region21
  $region20: #{soft_actor_forward.1} parent=0 // pred_region
    _
  $region21: #{soft_actor_forward.1} parent=0 // pred_fallthru
    _
  // Predicated region
  $region22: #{soft_actor_forward.1} parent=0 // pred_check
    _
  $region23: #{soft_actor_forward.1} parent=0 // pred_check_branch
    %23 = sbr.rel (0) target = $region25
  $region24: #{soft_actor_forward.1} parent=0 // pred_region
    _
  $region25: #{soft_actor_forward.1} parent=0 // pred_fallthru
    _
  // Predicated region
  $region26: #{soft_actor_forward.1} parent=0 // pred_check
    _
  $region27: #{soft_actor_forward.1} parent=0 // pred_check_branch
    %25 = sbr.rel (0) target = $region29
  $region28: #{soft_actor_forward.1} parent=0 // pred_region
    _
  $region29: #{soft_actor_forward.1} parent=0 // pred_fallthru
    _
  %v26 = vld [vmem:[%s0] sm:$0xff]
  %v27 = vld [vmem:[%s0 + $0x8] sm:$0xff]
  %v28 = vld [vmem:[%s1] sm:$0xff]
  %v29 = vld [vmem:[%s1 + $0x8] sm:$0xff]
  %v30 = vld [vmem:[%s2] sm:$0x1]
  %v32 = vlaneseq
  %v33 = vshrl.u32 %v32, 7
  %v34 = vsub.s32 0, %v33
  %v35 = vrot.slane %v30, %v34
  %vm37 = vcmask 130048
  %v39 = vsel %vm37, %v26, 0
  %v42 = vsel %vm37, %v27, 0
  %44 = vmatprep.subr.mxu0 0.0
  %45 = vmatpush1.msra.mxu0 0.0
  %46 = vmatprep.subr.mxu0 0.0
  %47 = vmatpush1.msra.mxu0 0.0
  %48 = vmatprep.subr.mxu0 0.0
  %49 = vmatpush1.msra.mxu0 0.0
  %50 = vmatprep.subr.mxu0 0.0
  %51 = vmatpush1.msra.mxu0 0.0
  %52 = vmatprep.subr.mxu0 0.0
  %53 = vmatpush1.msra.mxu0 0.0
  %54 = vmatprep.subr.mxu0 0.0
  %55 = vmatpush1.msra.mxu0 0.0
  %56 = vmatprep.subr.mxu0 0.0
  %57 = vmatpush1.msra.mxu0 0.0
  %58 = vmatprep.subr.mxu0 0.0
  %59 = vmatpush1.msra.mxu0 0.0
  %60 = vmatprep.subr.mxu0 0.0
  %61 = vmatpush1.msra.mxu0 0.0
  %62 = vmatprep.subr.mxu0 0.0
  %63 = vmatpush1.msra.mxu0 0.0
  %64 = vmatprep.subr.mxu0 0.0
  %65 = vmatpush1.msra.mxu0 0.0
  %66 = vmatprep.subr.mxu0 0.0
  %67 = vmatpush1.msra.mxu0 0.0
  %68 = vmatprep.subr.mxu0 0.0
  %69 = vmatpush1.msra.mxu0 0.0
  %70 = vmatprep.subr.mxu0 0.0
  %71 = vmatpush1.msra.mxu0 0.0
  %72 = vmatprep.subr.mxu0 0.0
  %73 = vmatpush1.msra.mxu0 %v29
  %74 = vmatprep.subr.mxu0 0.0
  %75 = vmatpush1.msra.mxu0 %v28
  %76 = vmatprep.subr.mxu0 0.0
  %77 = vmatpush2.msra.mxu0 0.0
  %78 = vmatprep.subr.mxu0 0.0
  %79 = vmatpush2.msra.mxu0 0.0
  %80 = vmatprep.subr.mxu0 0.0
  %81 = vmatpush2.msra.mxu0 0.0
  %82 = vmatprep.subr.mxu0 0.0
  %83 = vmatpush2.msra.mxu0 0.0
  %84 = vmatprep.subr.mxu0 0.0
  %85 = vmatpush2.msra.mxu0 0.0
  %86 = vmatprep.subr.mxu0 0.0
  %87 = vmatpush2.msra.mxu0 0.0
  %88 = vmatprep.subr.mxu0 0.0
  %89 = vmatpush2.msra.mxu0 0.0
  %90 = vmatprep.subr.mxu0 0.0
  %91 = vmatpush2.msra.mxu0 0.0
  %92 = vmatprep.subr.mxu0 0.0
  %93 = vmatpush2.msra.mxu0 0.0
  %94 = vmatprep.subr.mxu0 0.0
  %95 = vmatpush2.msra.mxu0 0.0
  %96 = vmatprep.subr.mxu0 0.0
  %97 = vmatpush2.msra.mxu0 0.0
  %98 = vmatprep.subr.mxu0 0.0
  %99 = vmatpush2.msra.mxu0 0.0
  %100 = vmatprep.subr.mxu0 0.0
  %101 = vmatpush2.msra.mxu0 0.0
  %102 = vmatprep.subr.mxu0 0.0
  %103 = vmatpush2.msra.mxu0 0.0
  %104 = vmatprep.subr.mxu0 0.0
  %105 = vmatpush2.msra.mxu0 0.0
  %106 = vmatprep.subr.mxu0 0.0
  %107 = vmatpush2.msra.mxu0 0.0
  %108 = vmatprep.mubr.f32.mxu0 0.0
  %109 = vmatmul.mubr.f32.gmra.mxu0 %v39
  %v110 = vpop.f32.mrf.mxu0
  %v111 = vadd.f32 %v35, %v110
  %v112 = vpop.f32.mrf.mxu0
  %113 = vmatprep.mubr.f32.mxu0 0.0
  %114 = vmatmul.mubr.f32.gmra.mxu0 %v42
  %v115 = vpop.f32.mrf.mxu0
  %v116 = vadd.f32 %v35, %v115
  %v117 = vpop.f32.mrf.mxu0
  %118 = vdwg.mxu0
  %v119 = vmax.f32 %v111, 0.0
  %v120 = vmax.f32 %v116, 0.0
  %v121 = vld [vmem:[%s3] sm:$0xff]
  %v122 = vld [vmem:[%s3 + $0x8] sm:$0xff]
  %v123 = vld [vmem:[%s3 + $0x10] sm:$0xff]
  %v124 = vld [vmem:[%s3 + $0x18] sm:$0xff]
  %v125 = vld [vmem:[%s3 + $0x20] sm:$0xff]
  %v126 = vld [vmem:[%s3 + $0x28] sm:$0xff]
  %v127 = vld [vmem:[%s3 + $0x30] sm:$0xff]
  %v128 = vld [vmem:[%s3 + $0x38] sm:$0xff]
  %v129 = vld [vmem:[%s3 + $0x40] sm:$0xff]
  %v130 = vld [vmem:[%s3 + $0x48] sm:$0xff]
  %v131 = vld [vmem:[%s3 + $0x50] sm:$0xff]
  %v132 = vld [vmem:[%s3 + $0x58] sm:$0xff]
  %v133 = vld [vmem:[%s3 + $0x60] sm:$0xff]
  %v134 = vld [vmem:[%s3 + $0x68] sm:$0xff]
  %v135 = vld [vmem:[%s3 + $0x70] sm:$0xff]
  %v136 = vld [vmem:[%s3 + $0x78] sm:$0xff]
  %v137 = vld [vmem:[%s4] sm:$0x1]
  %v139 = vlaneseq
  %v140 = vshrl.u32 %v139, 7
  %v141 = vsub.s32 0, %v140
  %v142 = vrot.slane %v137, %v141
  %144 = vmatprep.subr.mxu0 0.0
  %145 = vmatpush1.msra.mxu0 %v136
  %146 = vmatprep.subr.mxu0 0.0
  %147 = vmatpush1.msra.mxu0 %v135
  %148 = vmatprep.subr.mxu0 0.0
  %149 = vmatpush1.msra.mxu0 %v134
  %150 = vmatprep.subr.mxu0 0.0
  %151 = vmatpush1.msra.mxu0 %v133
  %152 = vmatprep.subr.mxu0 0.0
  %153 = vmatpush1.msra.mxu0 %v132
  %154 = vmatprep.subr.mxu0 0.0
  %155 = vmatpush1.msra.mxu0 %v131
  %156 = vmatprep.subr.mxu0 0.0
  %157 = vmatpush1.msra.mxu0 %v130
  %158 = vmatprep.subr.mxu0 0.0
  %159 = vmatpush1.msra.mxu0 %v129
  %160 = vmatprep.subr.mxu0 0.0
  %161 = vmatpush1.msra.mxu0 %v128
  %162 = vmatprep.subr.mxu0 0.0
  %163 = vmatpush1.msra.mxu0 %v127
  %164 = vmatprep.subr.mxu0 0.0
  %165 = vmatpush1.msra.mxu0 %v126
  %166 = vmatprep.subr.mxu0 0.0
  %167 = vmatpush1.msra.mxu0 %v125
  %168 = vmatprep.subr.mxu0 0.0
  %169 = vmatpush1.msra.mxu0 %v124
  %170 = vmatprep.subr.mxu0 0.0
  %171 = vmatpush1.msra.mxu0 %v123
  %172 = vmatprep.subr.mxu0 0.0
  %173 = vmatpush1.msra.mxu0 %v122
  %174 = vmatprep.subr.mxu0 0.0
  %175 = vmatpush1.msra.mxu0 %v121
  %176 = vmatprep.subr.mxu0 0.0
  %177 = vmatpush2.msra.mxu0 0.0
  %178 = vmatprep.subr.mxu0 0.0
  %179 = vmatpush2.msra.mxu0 0.0
  %180 = vmatprep.subr.mxu0 0.0
  %181 = vmatpush2.msra.mxu0 0.0
  %182 = vmatprep.subr.mxu0 0.0
  %183 = vmatpush2.msra.mxu0 0.0
  %184 = vmatprep.subr.mxu0 0.0
  %185 = vmatpush2.msra.mxu0 0.0
  %186 = vmatprep.subr.mxu0 0.0
  %187 = vmatpush2.msra.mxu0 0.0
  %188 = vmatprep.subr.mxu0 0.0
  %189 = vmatpush2.msra.mxu0 0.0
  %190 = vmatprep.subr.mxu0 0.0
  %191 = vmatpush2.msra.mxu0 0.0
  %192 = vmatprep.subr.mxu0 0.0
  %193 = vmatpush2.msra.mxu0 0.0
  %194 = vmatprep.subr.mxu0 0.0
  %195 = vmatpush2.msra.mxu0 0.0
  %196 = vmatprep.subr.mxu0 0.0
  %197 = vmatpush2.msra.mxu0 0.0
  %198 = vmatprep.subr.mxu0 0.0
  %199 = vmatpush2.msra.mxu0 0.0
  %200 = vmatprep.subr.mxu0 0.0
  %201 = vmatpush2.msra.mxu0 0.0
  %202 = vmatprep.subr.mxu0 0.0
  %203 = vmatpush2.msra.mxu0 0.0
  %204 = vmatprep.subr.mxu0 0.0
  %205 = vmatpush2.msra.mxu0 0.0
  %206 = vmatprep.subr.mxu0 0.0
  %207 = vmatpush2.msra.mxu0 0.0
  %208 = vmatprep.mubr.f32.mxu0 0.0
  %209 = vmatmul.mubr.f32.gmra.mxu0 %v119
  %v210 = vpop.f32.mrf.mxu0
  %v211 = vadd.f32 %v142, %v210
  %v212 = vpop.f32.mrf.mxu0
  %213 = vmatprep.mubr.f32.mxu0 0.0
  %214 = vmatmul.mubr.f32.gmra.mxu0 %v120
  %v215 = vpop.f32.mrf.mxu0
  %v216 = vadd.f32 %v142, %v215
  %v217 = vpop.f32.mrf.mxu0
  %218 = vdwg.mxu0
  %v219 = vmax.f32 %v211, 0.0
  %v220 = vmax.f32 %v216, 0.0
  %v221 = vld [vmem:[%s5] sm:$0xff]
  %v222 = vld [vmem:[%s5 + $0x8] sm:$0xff]
  %v223 = vld [vmem:[%s5 + $0x10] sm:$0xff]
  %v224 = vld [vmem:[%s5 + $0x18] sm:$0xff]
  %v225 = vld [vmem:[%s5 + $0x20] sm:$0xff]
  %v226 = vld [vmem:[%s5 + $0x28] sm:$0xff]
  %v227 = vld [vmem:[%s5 + $0x30] sm:$0xff]
  %v228 = vld [vmem:[%s5 + $0x38] sm:$0xff]
  %v229 = vld [vmem:[%s5 + $0x40] sm:$0xff]
  %v230 = vld [vmem:[%s5 + $0x48] sm:$0xff]
  %v231 = vld [vmem:[%s5 + $0x50] sm:$0xff]
  %v232 = vld [vmem:[%s5 + $0x58] sm:$0xff]
  %v233 = vld [vmem:[%s5 + $0x60] sm:$0xff]
  %v234 = vld [vmem:[%s5 + $0x68] sm:$0xff]
  %v235 = vld [vmem:[%s5 + $0x70] sm:$0xff]
  %v236 = vld [vmem:[%s5 + $0x78] sm:$0xff]
  %v237 = vld [vmem:[%s6] sm:$0x1]
  %v239 = vlaneseq
  %v240 = vshrl.u32 %v239, 7
  %v241 = vsub.s32 0, %v240
  %v242 = vrot.slane %v237, %v241
  %244 = vmatprep.subr.mxu0 0.0
  %245 = vmatpush1.msra.mxu0 %v236
  %246 = vmatprep.subr.mxu0 0.0
  %247 = vmatpush1.msra.mxu0 %v235
  %248 = vmatprep.subr.mxu0 0.0
  %249 = vmatpush1.msra.mxu0 %v234
  %250 = vmatprep.subr.mxu0 0.0
  %251 = vmatpush1.msra.mxu0 %v233
  %252 = vmatprep.subr.mxu0 0.0
  %253 = vmatpush1.msra.mxu0 %v232
  %254 = vmatprep.subr.mxu0 0.0
  %255 = vmatpush1.msra.mxu0 %v231
  %256 = vmatprep.subr.mxu0 0.0
  %257 = vmatpush1.msra.mxu0 %v230
  %258 = vmatprep.subr.mxu0 0.0
  %259 = vmatpush1.msra.mxu0 %v229
  %260 = vmatprep.subr.mxu0 0.0
  %261 = vmatpush1.msra.mxu0 %v228
  %262 = vmatprep.subr.mxu0 0.0
  %263 = vmatpush1.msra.mxu0 %v227
  %264 = vmatprep.subr.mxu0 0.0
  %265 = vmatpush1.msra.mxu0 %v226
  %266 = vmatprep.subr.mxu0 0.0
  %267 = vmatpush1.msra.mxu0 %v225
  %268 = vmatprep.subr.mxu0 0.0
  %269 = vmatpush1.msra.mxu0 %v224
  %270 = vmatprep.subr.mxu0 0.0
  %271 = vmatpush1.msra.mxu0 %v223
  %272 = vmatprep.subr.mxu0 0.0
  %273 = vmatpush1.msra.mxu0 %v222
  %274 = vmatprep.subr.mxu0 0.0
  %275 = vmatpush1.msra.mxu0 %v221
  %276 = vmatprep.subr.mxu0 0.0
  %277 = vmatpush2.msra.mxu0 0.0
  %278 = vmatprep.subr.mxu0 0.0
  %279 = vmatpush2.msra.mxu0 0.0
  %280 = vmatprep.subr.mxu0 0.0
  %281 = vmatpush2.msra.mxu0 0.0
  %282 = vmatprep.subr.mxu0 0.0
  %283 = vmatpush2.msra.mxu0 0.0
  %284 = vmatprep.subr.mxu0 0.0
  %285 = vmatpush2.msra.mxu0 0.0
  %286 = vmatprep.subr.mxu0 0.0
  %287 = vmatpush2.msra.mxu0 0.0
  %288 = vmatprep.subr.mxu0 0.0
  %289 = vmatpush2.msra.mxu0 0.0
  %290 = vmatprep.subr.mxu0 0.0
  %291 = vmatpush2.msra.mxu0 0.0
  %292 = vmatprep.subr.mxu0 0.0
  %293 = vmatpush2.msra.mxu0 0.0
  %294 = vmatprep.subr.mxu0 0.0
  %295 = vmatpush2.msra.mxu0 0.0
  %296 = vmatprep.subr.mxu0 0.0
  %297 = vmatpush2.msra.mxu0 0.0
  %298 = vmatprep.subr.mxu0 0.0
  %299 = vmatpush2.msra.mxu0 0.0
  %300 = vmatprep.subr.mxu0 0.0
  %301 = vmatpush2.msra.mxu0 0.0
  %302 = vmatprep.subr.mxu0 0.0
  %303 = vmatpush2.msra.mxu0 0.0
  %304 = vmatprep.subr.mxu0 0.0
  %305 = vmatpush2.msra.mxu0 0.0
  %306 = vmatprep.subr.mxu0 0.0
  %307 = vmatpush2.msra.mxu0 0.0
  %308 = vmatprep.mubr.f32.mxu0 0.0
  %309 = vmatmul.mubr.f32.gmra.mxu0 %v219
  %v310 = vpop.f32.mrf.mxu0
  %v311 = vadd.f32 %v242, %v310
  %v312 = vpop.f32.mrf.mxu0
  %313 = vmatprep.mubr.f32.mxu0 0.0
  %314 = vmatmul.mubr.f32.gmra.mxu0 %v220
  %v315 = vpop.f32.mrf.mxu0
  %v316 = vadd.f32 %v242, %v315
  %v317 = vpop.f32.mrf.mxu0
  %318 = vdwg.mxu0
  %v319 = vlaneseq
  %v320 = vand.u32 %v319, 127
  %vm321 = vcmp.ge.s32.totalorder %v320, 4
  %vm322 = vcmp.lt.s32.totalorder %v320, 8
  %vm323 = vmand %vm321, %vm322
  %v324 = vmax.f32 %v311, -20.0
  %v325 = vmax.f32 %v316, -20.0
  %v326 = vmin.f32 %v324, 2.0
  %v327 = vmin.f32 %v325, 2.0
  %v328 = vsel %vm323, %v326, %v311
  %v329 = vsel %vm323, %v327, %v316
  %330 = vst [vmem:[%s7] sm:$0xff] %v328
  %331 = vst [vmem:[%s7 + $0x8] sm:$0xff] %v329
  // Predicated region
  $region30: #{soft_actor_forward.1} parent=0 // pred_check
    _
  $region31: #{soft_actor_forward.1} parent=0 // pred_check_branch
    %333 = sbr.rel (0) target = $region33
  $region32: #{soft_actor_forward.1} parent=0 // pred_region
    _
  $region33: #{soft_actor_forward.1} parent=0 // pred_fallthru
    _
  // Predicated region
  $region34: #{soft_actor_forward.1} parent=0 // pred_check
    _
  $region35: #{soft_actor_forward.1} parent=0 // pred_check_branch
    %335 = sbr.rel (0) target = $region37
  $region36: #{soft_actor_forward.1} parent=0 // pred_region
    _
  $region37: #{soft_actor_forward.1} parent=0 // pred_fallthru
    _

</llo_original>
